<compile_context>
chip_gen: v5e
topology: v5e:2x2
jax: 0.10.0
libtpu: 0.0.40
codegen_flags: <defaults>
</compile_context>

<pallas_src>
import math
from typing import NamedTuple

import jax
import jax.numpy as jnp
from jax.experimental import pallas as pl
from jax.experimental.pallas import tpu as pltpu

_INV_SQRT2 = 1.0 / math.sqrt(2.0)


def _round_up(x, m):
    return ((x + m - 1) // m) * m


def _gelu_erf(y):
    # exact erf-based GELU (matches the PyTorch reference); multiply by
    # 1/sqrt(2) instead of dividing (VPU mul vs EUP recip+mul).
    return y * 0.5 * (1.0 + jax.lax.erf(y * _INV_SQRT2))


def _kernel_f32_out(x_ref, w_ref, b_ref, o_ref):
    # Output dtype is f32: use the resident output tile as the accumulator.
    # x_ref: (TM, TK) bf16/f32   w_ref: (TK, TN) bf16/f32   b_ref: (1, TN) f32
    # o_ref: (TM, TN) f32 (same block across the K axis -> persists)
    k = pl.program_id(2)

    @pl.when(k == 0)
    def _():
        o_ref[...] = jnp.zeros_like(o_ref)

    o_ref[...] += jnp.dot(x_ref[...], w_ref[...],
                          preferred_element_type=jnp.float32)

    @pl.when(k == pl.num_programs(2) - 1)
    def _():
        o_ref[...] = _gelu_erf(o_ref[...] + b_ref[...])


def _kernel_narrow_out(x_ref, w_ref, b_ref, o_ref, acc_ref):
    # Non-f32 output dtype: f32 VMEM accumulator, cast on the last K step.
    k = pl.program_id(2)

    @pl.when(k == 0)
    def _():
        acc_ref[...] = jnp.zeros_like(acc_ref)

    acc_ref[...] += jnp.dot(x_ref[...], w_ref[...],
                            preferred_element_type=jnp.float32)

    @pl.when(k == pl.num_programs(2) - 1)
    def _():
        o_ref[...] = _gelu_erf(acc_ref[...] + b_ref[...]).astype(o_ref.dtype)


class TransIntermediateParams(NamedTuple):
    w_hi: jax.Array       # (H_pad, I_pad), compute dtype (bf16 by default)
    b2d: jax.Array        # (1, I_pad), float32
    out_features: int     # I (unpadded)
    in_features: int      # H (unpadded)
    tn: int               # tile along I_pad (divides I_pad)
    tk: int               # tile along H_pad (divides H_pad)


def prepare_trans_intermediate_params(weight, bias, *, tn=1024, tk=512,
                                      compute_dtype=jnp.bfloat16):
    """One-time parameter prep (transpose + pad + cast hoisted out of the hot path).

    weight: (I, H) in PyTorch nn.Linear layout; bias: (I,)
    """
    I, H = weight.shape
    # Pad so the padded extent is an exact multiple of the tile (keeps the
    # grid from ever dropping a tail); small layers clamp to a single 128 tile.
    I_pad = _round_up(I, tn) if I >= tn else _round_up(I, 128)
    H_pad = _round_up(H, tk) if H >= tk else _round_up(H, 128)
    TN = min(tn, I_pad)
    TK = min(tk, H_pad)
    assert I_pad % TN == 0 and H_pad % TK == 0

    w_hi = (jnp.zeros((H_pad, I_pad), compute_dtype)
            .at[:H, :I].set(weight.T.astype(compute_dtype)))
    b2d = (jnp.zeros((1, I_pad), jnp.float32)
           .at[:, :I].set(bias.astype(jnp.float32)[None, :]))
    return TransIntermediateParams(w_hi, b2d, I, H, TN, TK)


def trans_intermediate(hidden_states, params: TransIntermediateParams, *, tm=512):
    """hidden_states: [B, S, H]; params from prepare_trans_intermediate_params."""
    B, S, H = hidden_states.shape
    w_hi, b2d = params.w_hi, params.b2d
    H_pad, I_pad = w_hi.shape
    TN, TK = params.tn, params.tk
    assert H == params.in_features, "hidden dim mismatch with prepared weight"
    assert I_pad % TN == 0 and H_pad % TK == 0

    compute_dtype = w_hi.dtype
    out_dtype = hidden_states.dtype
    M = B * S
    TM = min(tm, _round_up(M, 8))
    M_pad = _round_up(M, TM)

    # v7x megacore: make sure the parallel (i, j) grid has at least 2 blocks.
    if (M_pad // TM) * (I_pad // TN) < 2 and TN % 256 == 0:
        TN //= 2

    # Only pay the pad HBM round-trip when the shapes actually need it.
    x2d = hidden_states.reshape(M, H).astype(compute_dtype)
    if (M_pad, H_pad) != (M, H):
        x2d = jnp.zeros((M_pad, H_pad), compute_dtype).at[:M, :H].set(x2d)

    grid = (M_pad // TM, I_pad // TN, H_pad // TK)

    cdt = jnp.dtype(compute_dtype).itemsize
    odt = jnp.dtype(out_dtype).itemsize
    cost = pl.CostEstimate(
        flops=2 * M_pad * H_pad * I_pad,
        transcendentals=M_pad * I_pad,  # erf
        bytes_accessed=(M_pad * H_pad * cdt + H_pad * I_pad * cdt
                        + I_pad * 4 + M_pad * I_pad * odt),
    )

    in_specs = [
        pl.BlockSpec((TM, TK), lambda i, j, k: (i, k)),   # activation tile
        pl.BlockSpec((TK, TN), lambda i, j, k: (k, j)),   # weight tile
        pl.BlockSpec((1, TN), lambda i, j, k: (0, j)),    # bias tile (f32)
    ]
    out_spec = pl.BlockSpec((TM, TN), lambda i, j, k: (i, j))

    if out_dtype == jnp.float32:
        kernel = _kernel_f32_out
        scratch = []          # accumulate directly into the output tile
    else:
        kernel = _kernel_narrow_out
        scratch = [pltpu.VMEM((TM, TN), jnp.float32)]

    out = pl.pallas_call(
        kernel,
        out_shape=jax.ShapeDtypeStruct((M_pad, I_pad), out_dtype),
        grid_spec=pltpu.PrefetchScalarGridSpec(
            num_scalar_prefetch=0,
            grid=grid,
            in_specs=in_specs,
            out_specs=out_spec,
            scratch_shapes=scratch,
        ),
        compiler_params=pltpu.CompilerParams(
            dimension_semantics=("parallel", "parallel", "arbitrary")),
        cost_estimate=cost,
    )(x2d, w_hi, b2d)

    I = params.out_features
    if (M_pad, I_pad) != (M, I):
        out = out[:M, :I]
    return out.reshape(B, S, I)


if __name__ == "__main__":
    # Module config: hidden_size=32, intermediate_size=64, hidden_act='gelu'
    hidden_size = 32
    intermediate_size = 64
    batch, seq = 2, 8

    key = jax.random.PRNGKey(0)
    kx, kw, kb = jax.random.split(key, 3)

    hidden_states = jax.random.normal(kx, (batch, seq, hidden_size),
                                      dtype=jnp.float32)

    # Deterministic nn.Linear-style init: U(-1/sqrt(H), 1/sqrt(H))
    bound = 1.0 / math.sqrt(hidden_size)
    weight = jax.random.uniform(kw, (intermediate_size, hidden_size),
                                minval=-bound, maxval=bound, dtype=jnp.float32)
    bias = jax.random.uniform(kb, (intermediate_size,),
                              minval=-bound, maxval=bound, dtype=jnp.float32)

    # Pure-JAX reference (exact erf GELU, f32)
    ref = hidden_states.reshape(-1, hidden_size) @ weight.T + bias
    ref = ref * 0.5 * (1.0 + jax.lax.erf(ref / math.sqrt(2.0)))
    ref = ref.reshape(batch, seq, intermediate_size)

    # Fast path: bf16 MXU operands, f32 accumulation (default).
    params_bf16 = prepare_trans_intermediate_params(weight, bias)
    out_bf16 = trans_intermediate(hidden_states, params_bf16)
    jax.block_until_ready(out_bf16)
    assert out_bf16.shape == ref.shape, "shape mismatch vs reference"
    assert jnp.allclose(out_bf16, ref, atol=2e-2, rtol=2e-2), \
        "bf16 path mismatch vs reference"

    # Exact path: f32 operands, tight tolerance.
    params_f32 = prepare_trans_intermediate_params(weight, bias,
                                                   compute_dtype=jnp.float32)
    out_f32 = trans_intermediate(hidden_states, params_f32)
    jax.block_until_ready(out_f32)
    assert jnp.allclose(out_f32, ref, atol=1e-5, rtol=1e-5), \
        "f32 path mismatch vs reference"

    print("KERNEL_OK")
</pallas_src>

<mosaic_0001>
module attributes {stable_mosaic.version = 11 : i64} {
  func.func @_kernel_f32_out(%arg0: i32, %arg1: i32, %arg2: i32, %arg3: memref<16x128xbf16, #tpu.memory_space<vmem>>, %arg4: memref<128x128xbf16, #tpu.memory_space<vmem>>, %arg5: memref<1x128xf32, #tpu.memory_space<vmem>>, %arg6: memref<16x128xf32, #tpu.memory_space<vmem>>) attributes {dimension_semantics = [#tpu.dimension_semantics<parallel>, #tpu.dimension_semantics<parallel>, #tpu.dimension_semantics<arbitrary>], iteration_bounds = array<i64: 1, 1, 1>, scalar_prefetch = 0 : i64, scratch_operands = 0 : i64, tpu.core_type = #tpu.core_type<tc>, window_params = [{transform_indices = @transform_0, window_bounds = array<i64: 16, 128>}, {transform_indices = @transform_1, window_bounds = array<i64: 128, 128>}, {transform_indices = @transform_2, window_bounds = array<i64: 1, 128>}, {transform_indices = @transform_3, window_bounds = array<i64: 16, 128>}]} {
    %c0_i32 = arith.constant 0 : i32
    %0 = arith.cmpi eq, %arg2, %c0_i32 : i32
    %1 = arith.extui %0 : i1 to i32
    %c0_i32_0 = arith.constant 0 : i32
    %2 = arith.cmpi ne, %1, %c0_i32_0 : i32
    scf.if %2 {
      %cst_10 = arith.constant 0.000000e+00 : f32
      %12 = vector.broadcast %cst_10 : f32 to vector<16x128xf32>
      %c0_11 = arith.constant 0 : index
      %c0_12 = arith.constant 0 : index
      %13 = vector.load %arg6[%c0_11, %c0_12] : memref<16x128xf32, #tpu.memory_space<vmem>>, vector<16x128xf32>
      tpu.vector_store %arg6[%c0_11, %c0_12], %12 {strides = array<i32>} : memref<16x128xf32, #tpu.memory_space<vmem>>, vector<16x128xf32>,
    } else {
    }
    %c0 = arith.constant 0 : index
    %c0_1 = arith.constant 0 : index
    %3 = vector.load %arg6[%c0, %c0_1] : memref<16x128xf32, #tpu.memory_space<vmem>>, vector<16x128xf32>
    %c0_2 = arith.constant 0 : index
    %c0_3 = arith.constant 0 : index
    %4 = vector.load %arg3[%c0_2, %c0_3] : memref<16x128xbf16, #tpu.memory_space<vmem>>, vector<16x128xbf16>
    %c0_4 = arith.constant 0 : index
    %c0_5 = arith.constant 0 : index
    %5 = vector.load %arg4[%c0_4, %c0_5] : memref<128x128xbf16, #tpu.memory_space<vmem>>, vector<128x128xbf16>
    %cst = arith.constant dense<0.000000e+00> : vector<16x128xf32>
    %6 = tpu.matmul %4, %5, %cst {dimension_numbers = #tpu.dot_dimension_numbers<[1], [0], [0], [1], [0, 0, 1, 1], [], []>} : vector<16x128xbf16>, vector<128x128xbf16>, vector<16x128xf32> -> vector<16x128xf32>
    %7 = arith.addf %3, %6 : vector<16x128xf32>
    %c0_6 = arith.constant 0 : index
    %c0_7 = arith.constant 0 : index
    %8 = vector.load %arg6[%c0_6, %c0_7] : memref<16x128xf32, #tpu.memory_space<vmem>>, vector<16x128xf32>
    tpu.vector_store %arg6[%c0_6, %c0_7], %7 {strides = array<i32>} : memref<16x128xf32, #tpu.memory_space<vmem>>, vector<16x128xf32>,
    %c0_i32_8 = arith.constant 0 : i32
    %9 = arith.cmpi eq, %arg2, %c0_i32_8 : i32
    %10 = arith.extui %9 : i1 to i32
    %c0_i32_9 = arith.constant 0 : i32
    %11 = arith.cmpi ne, %10, %c0_i32_9 : i32
    scf.if %11 {
      %c0_10 = arith.constant 0 : index
      %c0_11 = arith.constant 0 : index
      %12 = vector.load %arg6[%c0_10, %c0_11] : memref<16x128xf32, #tpu.memory_space<vmem>>, vector<16x128xf32>
      %c0_12 = arith.constant 0 : index
      %c0_13 = arith.constant 0 : index
      %13 = vector.load %arg5[%c0_12, %c0_13] : memref<1x128xf32, #tpu.memory_space<vmem>>, vector<1x128xf32>
      %14 = vector.broadcast %13 : vector<1x128xf32> to vector<16x128xf32>
      %15 = arith.addf %12, %14 : vector<16x128xf32>
      %cst_14 = arith.constant 5.000000e-01 : f32
      %16 = vector.broadcast %cst_14 : f32 to vector<16x128xf32>
      %17 = arith.mulf %15, %16 : vector<16x128xf32>
      %cst_15 = arith.constant 0.707106769 : f32
      %18 = vector.broadcast %cst_15 : f32 to vector<16x128xf32>
      %19 = arith.mulf %15, %18 : vector<16x128xf32>
      %20 = math.erf %19 : vector<16x128xf32>
      %cst_16 = arith.constant 1.000000e+00 : f32
      %21 = vector.broadcast %cst_16 : f32 to vector<16x128xf32>
      %22 = arith.addf %21, %20 : vector<16x128xf32>
      %23 = arith.mulf %17, %22 : vector<16x128xf32>
      %c0_17 = arith.constant 0 : index
      %c0_18 = arith.constant 0 : index
      %24 = vector.load %arg6[%c0_17, %c0_18] : memref<16x128xf32, #tpu.memory_space<vmem>>, vector<16x128xf32>
      tpu.vector_store %arg6[%c0_17, %c0_18], %23 {strides = array<i32>} : memref<16x128xf32, #tpu.memory_space<vmem>>, vector<16x128xf32>,
    } else {
    }
    return
  }
  func.func @transform_0(%arg0: i32, %arg1: i32, %arg2: i32) -> (i32, i32) {
    %c0_i32 = arith.constant 0 : i32
    return %arg0, %arg2 : i32, i32
  }
  func.func @transform_1(%arg0: i32, %arg1: i32, %arg2: i32) -> (i32, i32) {
    %c0_i32 = arith.constant 0 : i32
    return %arg2, %arg1 : i32, i32
  }
  func.func @transform_2(%arg0: i32, %arg1: i32, %arg2: i32) -> (i32, i32) {
    %c0_i32 = arith.constant 0 : i32
    %c0_i32_0 = arith.constant 0 : i32
    return %c0_i32, %arg1 : i32, i32
  }
  func.func @transform_3(%arg0: i32, %arg1: i32, %arg2: i32) -> (i32, i32) {
    %c0_i32 = arith.constant 0 : i32
    return %arg0, %arg1 : i32, i32
  }
}

</mosaic_0001>

<llo_original>
// kernel: tpu_custom_call.1
$region0: #{tpu_custom_call.1}
  #allocation0 [shape = 'u32[]', space=smem, size = 0x4, offset = 0x4, fixed_abs, tag = 'smem constant byte address 0x4 - core index']
  #allocation1 [shape = 'u32[72,128]{1,0:T(1,128)}', space=vmem, size = 0x9000, scoped, tag = 'internal scratch']
  %s0 = inlined_call_operand.hbm [shape: bf16[16,128], index: 0, kind: input, shape index: {}]
  %s1 = inlined_call_operand.hbm [shape: bf16[128,128], index: 1, kind: input, shape index: {}]
  %s2 = inlined_call_operand.vmem [shape: f32[1,128], index: 2, kind: input, shape index: {}]
  %s3 = inlined_call_operand.hbm [shape: f32[16,128], index: 3, kind: output, shape index: {}]
  %s4 = sld [smem:[#allocation0]]
  $region38: #{tpu_custom_call.1} parent=0
    _
  %s6 = ssub.s32 1, %s4
  %s7 = scalar_select 0, %s6, %s4
  $region1: #{tpu_custom_call.1} parent=0
    #allocation2 [shape = 'u8[4096]{0}', space=vmem, size = 0x1000, scoped, tag = 'input window, operand 0, single buffered']
    #allocation3 [shape = 's32[1]{0}', space=sflag, size = 0x4, scoped, tag = 'scoped memory for tpu_custom_call.1']
    #allocation4 [shape = 's32[1]{0}', space=sflag, size = 0x4, scoped, tag = 'scoped memory for tpu_custom_call.1']
    #allocation5 [shape = 'u8[32768]{0}', space=vmem, size = 0x8000, scoped, tag = 'input window, operand 1, single buffered']
    #allocation6 [shape = 's32[1]{0}', space=sflag, size = 0x4, scoped, tag = 'scoped memory for tpu_custom_call.1']
    #allocation7 [shape = 'u8[8192]{0}', space=vmem, size = 0x2000, scoped, tag = 'output window, operand 0, single buffered']
    %8 = vsyncpa [#allocation3], 0
    %9 = vsyncpa [#allocation6], 0
    %10 = vsyncpa [#allocation4], 0
    // Predicated region
    $region2: #{tpu_custom_call.1} parent=1 // pred_check
      _
    $region3: #{tpu_custom_call.1} parent=1 // pred_check_branch
      %12 = sbr.rel (0) target = $region5
    $region4: #{tpu_custom_call.1} parent=1 // pred_region
      %14 = vsyncadd [#allocation3], 0
      %s15 = sshll.u32 %s0, 4
      %s16 = int_to_ptr.hbm [resolvable:$true] %s15
      %s17 = sshll.u32 [#allocation2], 4
      %s18 = int_to_ptr.vmem [resolvable:$true] %s17
      %23 = dma.hbm_to_vmem [thread:$0]  %s16, 128, %s18, [#allocation3], 64, 64, 4
    $region5: #{tpu_custom_call.1} parent=1 // pred_fallthru
      _
    // Predicated region
    $region6: #{tpu_custom_call.1} parent=1 // pred_check
      _
    $region7: #{tpu_custom_call.1} parent=1 // pred_check_branch
      %25 = sbr.rel (0) target = $region9
    $region8: #{tpu_custom_call.1} parent=1 // pred_region
      %27 = vsyncadd [#allocation6], 0
      %s28 = sshll.u32 %s1, 4
      %s29 = int_to_ptr.hbm [resolvable:$true] %s28
      %s30 = sshll.u32 [#allocation5], 4
      %s31 = int_to_ptr.vmem [resolvable:$true] %s30
      %36 = dma.hbm_to_vmem [thread:$0]  %s29, 1024, %s31, [#allocation6], 64, 64, 4
    $region9: #{tpu_custom_call.1} parent=1 // pred_fallthru
      _
    // Predicated region
    $region10: #{tpu_custom_call.1} parent=1 // pred_check
      _
    $region11: #{tpu_custom_call.1} parent=1 // pred_check_branch
      %38 = sbr.rel (0) target = $region13
    $region12: #{tpu_custom_call.1} parent=1 // pred_region
      _
    $region13: #{tpu_custom_call.1} parent=1 // pred_fallthru
      _
    // Predicated region
    $region14: #{tpu_custom_call.1} parent=1 // pred_check
      _
    $region15: #{tpu_custom_call.1} parent=1 // pred_check_branch
      %40 = sbr.rel (0) target = $region17
    $region16: #{tpu_custom_call.1} parent=1 // pred_region
      %42 = dma.done [#allocation3], 128
    $region17: #{tpu_custom_call.1} parent=1 // pred_fallthru
      _
    // Predicated region
    $region18: #{tpu_custom_call.1} parent=1 // pred_check
      _
    $region19: #{tpu_custom_call.1} parent=1 // pred_check_branch
      %44 = sbr.rel (0) target = $region21
    $region20: #{tpu_custom_call.1} parent=1 // pred_region
      %46 = dma.done [#allocation6], 1024
    $region21: #{tpu_custom_call.1} parent=1 // pred_fallthru
      _
    %p47 = scmp.eq.s32.totalorder 0, 0
    // Predicated region
    $region22: #{tpu_custom_call.1} parent=1 // pred_check
      %p48 = pneg %p47
    $region23: #{tpu_custom_call.1} parent=1 // pred_check_branch
      %50 = sbr.rel (%p48) target = $region25
    $region24: #{tpu_custom_call.1} parent=1 // pred_region
      %51 = vst [vmem:[#allocation7] sm:$0xff] 0.0
      %52 = vst [vmem:[#allocation7 + $0x8] sm:$0xff] 0.0
    $region25: #{tpu_custom_call.1} parent=1 // pred_fallthru
      _
    %v53 = vld [vmem:[#allocation7] sm:$0xff]
    %v54 = vld [vmem:[#allocation7 + $0x8] sm:$0xff]
    %v55 = vld [vmem:[#allocation2] sm:$0xf]
    %v56 = vld [vmem:[#allocation2 + $0x4] sm:$0xf]
    %v57 = vld [vmem:[#allocation5] sm:$0xf]
    %v58 = vld [vmem:[#allocation5 + $0x4] sm:$0xf]
    %v59 = vld [vmem:[#allocation5 + $0x8] sm:$0xf]
    %v60 = vld [vmem:[#allocation5 + $0xc] sm:$0xf]
    %v61 = vld [vmem:[#allocation5 + $0x10] sm:$0xf]
    %v62 = vld [vmem:[#allocation5 + $0x14] sm:$0xf]
    %v63 = vld [vmem:[#allocation5 + $0x18] sm:$0xf]
    %v64 = vld [vmem:[#allocation5 + $0x1c] sm:$0xf]
    %v65 = vld [vmem:[#allocation5 + $0x20] sm:$0xf]
    %v66 = vld [vmem:[#allocation5 + $0x24] sm:$0xf]
    %v67 = vld [vmem:[#allocation5 + $0x28] sm:$0xf]
    %v68 = vld [vmem:[#allocation5 + $0x2c] sm:$0xf]
    %v69 = vld [vmem:[#allocation5 + $0x30] sm:$0xf]
    %v70 = vld [vmem:[#allocation5 + $0x34] sm:$0xf]
    %v71 = vld [vmem:[#allocation5 + $0x38] sm:$0xf]
    %v72 = vld [vmem:[#allocation5 + $0x3c] sm:$0xf]
    %v75 = vunpack.c.l.b16 %v55
    %v76 = vunpack.c.l.b16 %v56
    %v77 = vpack.c.b16 %v76, %v75
    %v95 = vunpack.c.l.b16 %v57
    %v96 = vunpack.c.l.b16 %v58
    %v97 = vunpack.c.l.b16 %v59
    %v98 = vunpack.c.l.b16 %v60
    %v99 = vunpack.c.l.b16 %v61
    %v100 = vunpack.c.l.b16 %v62
    %v101 = vunpack.c.l.b16 %v63
    %v102 = vunpack.c.l.b16 %v64
    %v103 = vunpack.c.l.b16 %v65
    %v104 = vunpack.c.l.b16 %v66
    %v105 = vunpack.c.l.b16 %v67
    %v106 = vunpack.c.l.b16 %v68
    %v107 = vunpack.c.l.b16 %v69
    %v108 = vunpack.c.l.b16 %v70
    %v109 = vunpack.c.l.b16 %v71
    %v110 = vunpack.c.l.b16 %v72
    %v111 = vpack.c.b16 %v96, %v95
    %v112 = vpack.c.b16 %v98, %v97
    %v113 = vpack.c.b16 %v100, %v99
    %v114 = vpack.c.b16 %v102, %v101
    %v115 = vpack.c.b16 %v104, %v103
    %v116 = vpack.c.b16 %v106, %v105
    %v117 = vpack.c.b16 %v108, %v107
    %v118 = vpack.c.b16 %v110, %v109
    %127 = vmatpush.bf16.msra.mxu0 %v118
    %128 = vmatpush.bf16.msra.mxu0 %v117
    %129 = vmatpush.bf16.msra.mxu0 %v116
    %130 = vmatpush.bf16.msra.mxu0 %v115
    %131 = vmatpush.bf16.msra.mxu0 %v114
    %132 = vmatpush.bf16.msra.mxu0 %v113
    %133 = vmatpush.bf16.msra.mxu0 %v112
    %134 = vmatpush.bf16.msra.mxu0 %v111
    %135 = vmatmul.bf16.gmra.mxu0 %v77
    %v136 = vpop.f32.mrf.mxu0
    %v137 = vadd.f32 0.0, %v136
    %v138 = vpop.f32.mrf.mxu0
    %v139 = vadd.f32 0.0, %v138
    %140 = vdwg.mxu0
    %v141 = vadd.f32 %v53, %v137
    %v142 = vadd.f32 %v54, %v139
    %143 = vst [vmem:[#allocation7] sm:$0xff] %v141
    %144 = vst [vmem:[#allocation7 + $0x8] sm:$0xff] %v142
    // Predicated region
    $region26: #{tpu_custom_call.1} parent=1 // pred_check
      %p145 = pneg %p47
    $region27: #{tpu_custom_call.1} parent=1 // pred_check_branch
      %147 = sbr.rel (%p145) target = $region29
    $region28: #{tpu_custom_call.1} parent=1 // pred_region
      %v148 = vld [vmem:[#allocation7] sm:$0xff]
      %v149 = vld [vmem:[#allocation7 + $0x8] sm:$0xff]
      %v150 = vld [vmem:[%s2] sm:$0x1]
      %v152 = vperm.slane %v150, 0
      %v154 = vadd.f32 %v148, %v152
      %v155 = vadd.f32 %v149, %v152
      %v156 = vmul.f32 %v154, 0.5
      %v157 = vmul.f32 %v155, 0.5
      %v158 = vmul.f32 %v154, 0.70710677
      %v159 = vmul.f32 %v155, 0.70710677
      %v160 = vmul.f32 %v158, %v158
      %v161 = vmin.f32 16.0, %v160
      %v162 = vmul.f32 %v161, 2.1237322e-06
      %v163 = vadd.f32 %v162, 0.00028619796
      %v164 = vmul.f32 %v161, %v163
      %v165 = vadd.f32 %v164, 0.0036580483
      %v166 = vmul.f32 %v161, %v165
      %v167 = vadd.f32 %v166, 0.05243302
      %v168 = vmul.f32 %v161, %v167
      %v169 = vadd.f32 %v168, 0.18741608
      %v170 = vmul.f32 %v161, %v169
      %v171 = vadd.f32 %v170, 1.1283791
      %v172 = vmul.f32 %v158, %v171
      %v173 = vmul.f32 %v161, 3.8918573e-05
      %v174 = vadd.f32 %v173, 0.001143296
      %v175 = vmul.f32 %v161, %v174
      %v176 = vadd.f32 %v175, 0.014752088
      %v177 = vmul.f32 %v161, %v176
      %v178 = vadd.f32 %v177, 0.112945676
      %v179 = vmul.f32 %v161, %v178
      %v180 = vadd.f32 %v179, 0.4994258
      %v181 = vmul.f32 %v161, %v180
      %v182 = vadd.f32 %v181, 1.0
      %v183 = vrcp.pop %v182
      %v184 = vmul.f32 %v182, %v183
      %v185 = vsub.f32 1.0, %v184
      %v186 = vmul.f32 %v183, %v185
      %v187 = vadd.f32 %v183, %v186
      %vm188 = vweird.f32 %v182
      %vm189 = vweird.f32 %v183
      %vm190 = vmor %vm188, %vm189
      %v191 = vsel %vm190, %v183, %v187
      %v192 = vand.u32 2147483647, %v182
      %vm193 = vcmp.eq.f32.partialorder %v192, 8.507059e+37
      %v194 = vand.u32 %v182, 2147483648
      %v195 = vor.u32 1.1754944e-38, %v194
      %v196 = vsel %vm193, %v195, %v191
      %v197 = vmul.f32 %v172, %v196
      %v198 = vmin.f32 %v197, 1.0
      %v199 = vmax.f32 %v198, -1.0
      %v200 = vmul.f32 %v159, %v159
      %v201 = vmin.f32 16.0, %v200
      %v202 = vmul.f32 %v201, 2.1237322e-06
      %v203 = vadd.f32 %v202, 0.00028619796
      %v204 = vmul.f32 %v201, %v203
      %v205 = vadd.f32 %v204, 0.0036580483
      %v206 = vmul.f32 %v201, %v205
      %v207 = vadd.f32 %v206, 0.05243302
      %v208 = vmul.f32 %v201, %v207
      %v209 = vadd.f32 %v208, 0.18741608
      %v210 = vmul.f32 %v201, %v209
      %v211 = vadd.f32 %v210, 1.1283791
      %v212 = vmul.f32 %v159, %v211
      %v213 = vmul.f32 %v201, 3.8918573e-05
      %v214 = vadd.f32 %v213, 0.001143296
      %v215 = vmul.f32 %v201, %v214
      %v216 = vadd.f32 %v215, 0.014752088
      %v217 = vmul.f32 %v201, %v216
      %v218 = vadd.f32 %v217, 0.112945676
      %v219 = vmul.f32 %v201, %v218
      %v220 = vadd.f32 %v219, 0.4994258
      %v221 = vmul.f32 %v201, %v220
      %v222 = vadd.f32 %v221, 1.0
      %v223 = vrcp.pop %v222
      %v224 = vmul.f32 %v222, %v223
      %v225 = vsub.f32 1.0, %v224
      %v226 = vmul.f32 %v223, %v225
      %v227 = vadd.f32 %v223, %v226
      %vm228 = vweird.f32 %v222
      %vm229 = vweird.f32 %v223
      %vm230 = vmor %vm228, %vm229
      %v231 = vsel %vm230, %v223, %v227
      %v232 = vand.u32 2147483647, %v222
      %vm233 = vcmp.eq.f32.partialorder %v232, 8.507059e+37
      %v234 = vand.u32 %v222, 2147483648
      %v235 = vor.u32 1.1754944e-38, %v234
      %v236 = vsel %vm233, %v235, %v231
      %v237 = vmul.f32 %v212, %v236
      %v238 = vmin.f32 %v237, 1.0
      %v239 = vmax.f32 %v238, -1.0
      %v240 = vadd.f32 %v199, 1.0
      %v241 = vadd.f32 %v239, 1.0
      %v242 = vmul.f32 %v156, %v240
      %v243 = vmul.f32 %v157, %v241
      %244 = vst [vmem:[#allocation7] sm:$0xff] %v242
      %245 = vst [vmem:[#allocation7 + $0x8] sm:$0xff] %v243
    $region29: #{tpu_custom_call.1} parent=1 // pred_fallthru
      _
    // Predicated region
    $region30: #{tpu_custom_call.1} parent=1 // pred_check
      _
    $region31: #{tpu_custom_call.1} parent=1 // pred_check_branch
      %247 = sbr.rel (0) target = $region33
    $region32: #{tpu_custom_call.1} parent=1 // pred_region
      %249 = vsyncadd [#allocation4], 0
      %s250 = sshll.u32 [#allocation7], 4
      %s251 = int_to_ptr.vmem [resolvable:$true] %s250
      %s252 = sshll.u32 %s3, 4
      %s253 = int_to_ptr.hbm [resolvable:$true] %s252
      %258 = dma.vmem_to_hbm [thread:$0]  %s251, 256, %s253, [#allocation4], 128, 128, 8
    $region33: #{tpu_custom_call.1} parent=1 // pred_fallthru
      _
    // Predicated region
    $region34: #{tpu_custom_call.1} parent=1 // pred_check
      _
    $region35: #{tpu_custom_call.1} parent=1 // pred_check_branch
      %260 = sbr.rel (0) target = $region37
    $region36: #{tpu_custom_call.1} parent=1 // pred_region
      %262 = dma.done [#allocation4], 256
    $region37: #{tpu_custom_call.1} parent=1 // pred_fallthru
      _
    %263 = vsyncpa [#allocation3], 1
    %264 = vsyncpa [#allocation6], 1
    %265 = vsyncpa [#allocation4], 1

</llo_original>
